<compile_context>
chip_gen: v7x
topology: tpu7x:2x2x1
jax: 0.10.0
libtpu: 0.0.40
codegen_flags: <defaults>
</compile_context>

<pallas_src>
import functools
from collections import namedtuple
from functools import partial

import jax
import jax.numpy as jnp
from jax.experimental import pallas as pl
from jax.experimental.pallas import tpu as pltpu


_TARGET_BLOCK_BYTES = 2 << 20          # ~2 MiB input blocks: >=85% of HBM roofline
_F32_MAX = float(jnp.finfo(jnp.float32).max)

_PAR = getattr(pltpu, "PARALLEL", "parallel")
_ARB = getattr(pltpu, "ARBITRARY", "arbitrary")
_CORE_PAR = getattr(pltpu, "CORE_PARALLEL", _PAR)

_DeviceProfile = namedtuple(
    "_DeviceProfile", ["vmem_bytes", "num_tc", "has_bf16_vpu", "vmem_cap_bytes"])


@functools.lru_cache(maxsize=1)
def _device_profile():
    """Best-effort chip detection; falls back to conservative (v7x-like) limits."""
    vmem = 64 << 20
    try:
        vmem = int(pltpu.get_tpu_info().vmem_capacity_bytes)
    except Exception:
        pass
    kind = ""
    try:
        kind = jax.devices()[0].device_kind.lower()
    except Exception:
        pass
    num_tc = 2 if "v7" in kind else 1                 # v7x: 2 TensorCores / chip
    has_bf16_vpu = ("v6" in kind) or ("v7" in kind)   # v5e has no bf16 VALU
    # Scoped-VMEM ceiling we are willing to request for these pallas_calls.
    vmem_cap = (96 << 20) if vmem >= (96 << 20) else (48 << 20)
    return _DeviceProfile(vmem, num_tc, has_bf16_vpu, vmem_cap)


# ---------------------------------------------------------------------------
# small helpers
# ---------------------------------------------------------------------------

def _round_down(x, m):
    return (x // m) * m


def _round_up(x, m):
    return ((x + m - 1) // m) * m


def _per_elem_vmem_cost(itemsize, c_itemsize):
    # double-buffered in + out blocks, ~3 compute-dtype temporaries, small slack.
    return 4 * itemsize + 3 * c_itemsize + 2


def _max_block_elems(itemsize, c_itemsize, vmem_cap_bytes):
    return max(8 * 128,
               (vmem_cap_bytes - (8 << 20)) // _per_elem_vmem_cost(itemsize, c_itemsize))


def _vmem_limit_bytes(block_elems, itemsize, c_itemsize, vmem_cap_bytes):
    need = _per_elem_vmem_cost(itemsize, c_itemsize) * block_elems + (4 << 20)
    return int(min(max(need, 16 << 20), vmem_cap_bytes))


def _compute_dtype(dtype, profile):
    d = jnp.dtype(dtype)
    if d == jnp.float32:
        return jnp.float32
    if d == jnp.dtype(jnp.bfloat16) and profile.has_bf16_vpu:
        return jnp.bfloat16          # native bf16 VPU path (v6e / v7x)
    return jnp.float32               # bf16-on-v5e, f16, etc.: upcast to f32


def _run_row_sharded(build_call, row_sem, *args):
    """Run build_call(row_sem)(*args); if CORE_PARALLEL is rejected on this chip /
    shape, retry with plain PARALLEL (identical semantics: every grid step on the
    row axis routed through here is fully independent)."""
    if row_sem is not _PAR:
        try:
            return build_call(row_sem)(*args)
        except Exception:
            pass
    return build_call(_PAR)(*args)


# ---------------------------------------------------------------------------
# kernels
# ---------------------------------------------------------------------------

def _autocontrast_rows_kernel(x_ref, o_ref, *, compute_dtype):
    """Whole rows (H*W) in one block: reduce + normalize in a single pass.
    Rows in the partial last block (cdiv grid) compute garbage that Pallas never
    writes back, so no host-side pad/slice is needed."""
    cd = compute_dtype
    x = x_ref[...].astype(cd)                                        # (rt, hw)
    mn = jnp.min(x, axis=-1, keepdims=True).astype(jnp.float32)
    mx = jnp.max(x, axis=-1, keepdims=True).astype(jnp.float32)
    inv = 1.0 / (mx - mn)                                            # +inf when mx == mn
    degenerate = inv > _F32_MAX
    scale = jnp.where(degenerate, 1.0, inv).astype(cd)
    mn_eff = jnp.where(degenerate, 0.0, mn).astype(cd)
    o_ref[...] = jnp.clip((x - mn_eff) * scale, 0.0, 1.0).astype(o_ref.dtype)


def _minmax_stats_kernel(x_ref, mn_ref, scale_ref, mn_sc, mx_sc, *,
                         hw, compute_dtype, need_mask):
    """Huge-plane pass 1: running per-row min/max over hw tiles; the epilogue
    emits precomputed (mn_eff, scale) so pass 2 is a pure multiply-add + clip."""
    j = pl.program_id(1)

    @pl.when(j == 0)
    def _():
        mn_sc[...] = jnp.full_like(mn_sc, jnp.inf)
        mx_sc[...] = jnp.full_like(mx_sc, -jnp.inf)

    x = x_ref[...].astype(compute_dtype)
    if need_mask:
        # cdiv grid over hw: out-of-range lanes in the last block hold undefined
        # data -- neutralize them for the reductions.
        ht = x.shape[-1]
        col = jax.lax.broadcasted_iota(jnp.int32, x.shape, 1) + j * ht
        valid = col < hw
        x_min = jnp.where(valid, x, jnp.inf)
        x_max = jnp.where(valid, x, -jnp.inf)
    else:
        x_min = x_max = x
    mn_sc[...] = jnp.minimum(
        mn_sc[...], jnp.min(x_min, axis=-1, keepdims=True).astype(jnp.float32))
    mx_sc[...] = jnp.maximum(
        mx_sc[...], jnp.max(x_max, axis=-1, keepdims=True).astype(jnp.float32))

    @pl.when(j == pl.num_programs(1) - 1)
    def _():
        mn = mn_sc[...]
        inv = 1.0 / (mx_sc[...] - mn)
        degenerate = inv > _F32_MAX
        scale_ref[...] = jnp.where(degenerate, 1.0, inv)
        mn_ref[...] = jnp.where(degenerate, 0.0, mn)


def _normalize_kernel(mn_ref, scale_ref, x_ref, o_ref, *, compute_dtype):
    """Huge-plane pass 2: out = clip((x - mn_eff) * scale, 0, 1)."""
    cd = compute_dtype
    mn = mn_ref[...].astype(cd)
    sc = scale_ref[...].astype(cd)
    o_ref[...] = jnp.clip((x_ref[...].astype(cd) - mn) * sc, 0.0, 1.0).astype(o_ref.dtype)


# ---------------------------------------------------------------------------
# wrappers
# ---------------------------------------------------------------------------

def _autocontrast_rows(x2d, *, profile, compute_dtype, donate_input=False,
                       target_block_bytes=_TARGET_BLOCK_BYTES, max_block_elems=None):
    rows, hw = x2d.shape
    itemsize = jnp.dtype(x2d.dtype).itemsize
    c_itemsize = jnp.dtype(compute_dtype).itemsize
    sublane = max(8, 32 // itemsize)           # 8 rows for f32, 16 for bf16

    if max_block_elems is None:
        max_block_elems = _max_block_elems(itemsize, c_itemsize, profile.vmem_cap_bytes)

    if rows <= sublane:
        rt = rows                              # single full-dim block: always legal
    else:
        cap_rt = max(sublane, _round_down(max_block_elems // hw, sublane))
        rt = max(sublane, _round_down((target_block_bytes // itemsize) // hw, sublane))
        rt = min(rt, cap_rt, rows)
        # Keep enough grid steps to pipeline (and, on v7x, to feed both TensorCores),
        # but only when there is enough work to split; 1-TC chips never shrink below
        # 2 steps (extra steps there are just a serial loop).
        min_steps = 2 * profile.num_tc
        if pl.cdiv(rows, rt) < min_steps and rows >= min_steps * sublane:
            rt = max(sublane, _round_down(pl.cdiv(rows, min_steps), sublane))

    grid_rows = pl.cdiv(rows, rt)
    vmem_limit = _vmem_limit_bytes(rt * hw, itemsize, c_itemsize, profile.vmem_cap_bytes)
    kernel = partial(_autocontrast_rows_kernel, compute_dtype=compute_dtype)

    def build(row_sem):
        return pl.pallas_call(
            kernel,
            out_shape=jax.ShapeDtypeStruct((rows, hw), x2d.dtype),
            grid_spec=pltpu.PrefetchScalarGridSpec(
                num_scalar_prefetch=0,
                grid=(grid_rows,),
                in_specs=[pl.BlockSpec((rt, hw), lambda i: (i, 0))],
                out_specs=pl.BlockSpec((rt, hw), lambda i: (i, 0)),
            ),
            compiler_params=pltpu.CompilerParams(
                dimension_semantics=(row_sem,),
                vmem_limit_bytes=vmem_limit,
            ),
            cost_estimate=pl.CostEstimate(
                flops=3 * rows * hw,
                transcendentals=0,
                bytes_accessed=2 * rows * hw * itemsize,
            ),
            # Aliasing is now genuine (no padded temporary): callers that discard
            # the input can reuse its HBM buffer.
            input_output_aliases={0: 0} if donate_input else {},
        )

    row_sem = _CORE_PAR if (profile.num_tc >= 2 and grid_rows >= 2) else _PAR
    return _run_row_sharded(build, row_sem, x2d)


def _autocontrast_two_pass(x2d, *, profile, compute_dtype,
                           target_block_bytes=_TARGET_BLOCK_BYTES,
                           max_block_bytes=None):
    rows, hw = x2d.shape
    itemsize = jnp.dtype(x2d.dtype).itemsize
    c_itemsize = jnp.dtype(compute_dtype).itemsize
    sublane = max(8, 32 // itemsize)
    f32 = jnp.float32

    if max_block_bytes is None:
        max_block_elems = _max_block_elems(itemsize, c_itemsize, profile.vmem_cap_bytes)
    else:
        max_block_elems = max(sublane * 128, max_block_bytes // itemsize)
    target_elems = min(max(sublane * 128, target_block_bytes // itemsize), max_block_elems)

    # Row tile: a few sublanes (wider than the minimum so per-step (rt,1) stat DMAs
    # and grid-step overhead are amortized).
    rt = min(4 * sublane, _round_up(rows, sublane),
             max(sublane, _round_down(max_block_elems // 128, sublane)))
    if rt >= rows:
        rt = rows                              # full-dim rows block (always legal)
    # Lane tile: multiple of 128; cdiv grid + in-kernel mask handles ragged hw.
    ht_cap = max(128, _round_down(max_block_elems // rt, 128))
    ht = max(128, _round_down(target_elems // rt, 128))
    ht = min(ht, ht_cap)
    if ht >= hw:
        ht = hw                                # full-dim lane block

    grid = (pl.cdiv(rows, rt), pl.cdiv(hw, ht))
    need_mask = (ht < hw) and (hw % ht != 0)
    vmem_limit = _vmem_limit_bytes(rt * ht, itemsize, c_itemsize, profile.vmem_cap_bytes)
    row_sem = _CORE_PAR if (profile.num_tc >= 2 and grid[0] >= 2) else _PAR

    stats_shape = jax.ShapeDtypeStruct((rows, 1), f32)
    stats_kernel = partial(_minmax_stats_kernel, hw=hw,
                           compute_dtype=compute_dtype, need_mask=need_mask)

    # Pass 1: per-row (mn_eff, scale). Row axis kept plain "parallel" because the
    # running min/max live in VMEM scratch across the (arbitrary) hw axis.
    # TODO(synk): shard pass 1's row axis across v7x TensorCores once the scratch
    # semantics under CORE_PARALLEL are verified.
    mn_eff, scale = pl.pallas_call(
        stats_kernel,
        out_shape=(stats_shape, stats_shape),
        grid_spec=pltpu.PrefetchScalarGridSpec(
            num_scalar_prefetch=0,
            grid=grid,
            in_specs=[pl.BlockSpec((rt, ht), lambda i, j: (i, j))],
            out_specs=(pl.BlockSpec((rt, 1), lambda i, j: (i, 0)),
                       pl.BlockSpec((rt, 1), lambda i, j: (i, 0))),
            scratch_shapes=[pltpu.VMEM((rt, 1), f32),
                            pltpu.VMEM((rt, 1), f32)],
        ),
        compiler_params=pltpu.CompilerParams(
            dimension_semantics=(_PAR, _ARB),
            vmem_limit_bytes=vmem_limit,
        ),
        cost_estimate=pl.CostEstimate(
            flops=2 * rows * hw,
            transcendentals=0,
            bytes_accessed=rows * hw * itemsize + 8 * rows,
        ),
    )(x2d)

    norm_kernel = partial(_normalize_kernel, compute_dtype=compute_dtype)

    def build_norm(sem):
        return pl.pallas_call(
            norm_kernel,
            out_shape=jax.ShapeDtypeStruct((rows, hw), x2d.dtype),
            grid_spec=pltpu.PrefetchScalarGridSpec(
                num_scalar_prefetch=0,
                grid=grid,
                in_specs=[pl.BlockSpec((rt, 1), lambda i, j: (i, 0)),
                          pl.BlockSpec((rt, 1), lambda i, j: (i, 0)),
                          pl.BlockSpec((rt, ht), lambda i, j: (i, j))],
                out_specs=pl.BlockSpec((rt, ht), lambda i, j: (i, j)),
            ),
            compiler_params=pltpu.CompilerParams(
                dimension_semantics=(sem, _ARB),
                vmem_limit_bytes=vmem_limit,
            ),
            cost_estimate=pl.CostEstimate(
                flops=3 * rows * hw,
                transcendentals=0,
                bytes_accessed=2 * rows * hw * itemsize + 8 * rows,
            ),
        )

    return _run_row_sharded(build_norm, row_sem, mn_eff, scale, x2d)


def autocontrast(img, *, donate_input=False):
    """img: float array (..., H, W) (e.g. NCHW). Autocontrast applied per leading
    plane over the last two axes; same shape/dtype as the input."""
    if img.ndim < 2:
        raise ValueError("autocontrast expects at least 2 dims (..., H, W)")
    H, W = img.shape[-2], img.shape[-1]
    rows = 1
    for d in img.shape[:-2]:
        rows *= int(d)
    hw = H * W
    x2d = img.reshape(rows, hw)

    profile = _device_profile()
    cd = _compute_dtype(img.dtype, profile)
    itemsize = jnp.dtype(img.dtype).itemsize
    c_itemsize = jnp.dtype(cd).itemsize
    sublane = max(8, 32 // itemsize)
    max_block_elems = _max_block_elems(itemsize, c_itemsize, profile.vmem_cap_bytes)

    # Single pass (whole rows per block) whenever the smallest legal row block fits
    # the VMEM budget; otherwise split the hw axis over two passes (~1.5x ideal
    # HBM traffic but never VMEM-OOMs).
    if min(rows, sublane) * hw <= max_block_elems:
        out2d = _autocontrast_rows(x2d, profile=profile, compute_dtype=cd,
                                   donate_input=donate_input,
                                   max_block_elems=max_block_elems)
    else:
        out2d = _autocontrast_two_pass(x2d, profile=profile, compute_dtype=cd)
    return out2d.reshape(img.shape)


def _autocontrast_ref(img):
    """Pure-JAX reference mirroring torchvision autocontrast (float path)."""
    x = img.astype(jnp.float32)
    mn = jnp.min(x, axis=(-2, -1), keepdims=True)
    mx = jnp.max(x, axis=(-2, -1), keepdims=True)
    inv = 1.0 / (mx - mn)
    degenerate = ~jnp.isfinite(inv)
    scale = jnp.where(degenerate, 1.0, inv)
    mn = jnp.where(degenerate, 0.0, mn)
    return jnp.clip((x - mn) * scale, 0.0, 1.0).astype(img.dtype)


class AutoContrast:
    """Mirror of the PyTorch module. M is kept for parity but unused in forward."""

    def __init__(self, M):
        self.M = M / 16 * 10  # dead state in the reference module's forward

    def __call__(self, img):
        return autocontrast(img)


if __name__ == "__main__":
    def _ref2d(x2d):
        return _autocontrast_ref(x2d[:, None, :])[:, 0, :]

    prof = _device_profile()

    key = jax.random.PRNGKey(0)
    N, C, H, W = 2, 4, 16, 16
    img = jax.random.uniform(key, (N, C, H, W), dtype=jnp.float32,
                             minval=0.1, maxval=0.9)
    img = img.at[0, 1].set(0.5)          # constant channel -> degenerate identity path

    mod = AutoContrast(M=8)
    out = jax.block_until_ready(mod(img))
    ref = _autocontrast_ref(img)
    assert out.shape == img.shape and out.dtype == img.dtype
    assert jnp.allclose(out, ref, atol=1e-6, rtol=1e-6)

    # Rows not a multiple of 8 (3 * 4 = 12): handled with no host pad / slice.
    img2 = jax.random.uniform(jax.random.PRNGKey(1), (3, 4, 16, 16), dtype=jnp.float32)
    out2 = jax.block_until_ready(autocontrast(img2))
    assert jnp.allclose(out2, _autocontrast_ref(img2), atol=1e-6, rtol=1e-6)

    # Forced small tile -> multi-step cdiv grid with a partial last row block.
    x3 = jax.random.uniform(jax.random.PRNGKey(2), (12, 256), dtype=jnp.float32)
    out3 = jax.block_until_ready(
        _autocontrast_rows(x3, profile=prof, compute_dtype=jnp.float32,
                           target_block_bytes=4 << 10))
    assert jnp.allclose(out3, _ref2d(x3), atol=1e-6, rtol=1e-6)

    # Two-pass (huge-plane) path exercised on a small slab via forced tiny budgets.
    x4 = jax.random.uniform(jax.random.PRNGKey(3), (16, 1024), dtype=jnp.float32)
    out4 = jax.block_until_ready(
        _autocontrast_two_pass(x4, profile=prof, compute_dtype=jnp.float32,
                               target_block_bytes=8 << 10, max_block_bytes=16 << 10))
    assert jnp.allclose(out4, _ref2d(x4), atol=1e-6, rtol=1e-6)

    # Two-pass with ragged hw -> exercises the in-kernel lane mask + masked writes.
    x5 = jax.random.uniform(jax.random.PRNGKey(4), (12, 1000), dtype=jnp.float32)
    out5 = jax.block_until_ready(
        _autocontrast_two_pass(x5, profile=prof, compute_dtype=jnp.float32,
                               target_block_bytes=8 << 10, max_block_bytes=16 << 10))
    assert jnp.allclose(out5, _ref2d(x5), atol=1e-6, rtol=1e-6)

    # bf16: native-bf16 compute on v6e/v7x, f32 compute on v5e (loose tolerance).
    imgb = jax.random.uniform(jax.random.PRNGKey(5), (2, 4, 16, 16), dtype=jnp.bfloat16)
    outb = jax.block_until_ready(autocontrast(imgb))
    refb = _autocontrast_ref(imgb)
    assert outb.dtype == imgb.dtype
    assert jnp.allclose(outb.astype(jnp.float32), refb.astype(jnp.float32), atol=5e-2)

    print("KERNEL_OK")
</pallas_src>

<mosaic_0001>
module attributes {stable_mosaic.version = 11 : i64} {
  func.func @_autocontrast_rows_kernel(%arg0: i32, %arg1: memref<8x256xf32, #tpu.memory_space<vmem>>, %arg2: memref<8x256xf32, #tpu.memory_space<vmem>>) attributes {dimension_semantics = [#tpu.dimension_semantics<parallel>], iteration_bounds = array<i64: 1>, scalar_prefetch = 0 : i64, scratch_operands = 0 : i64, tpu.core_type = #tpu.core_type<tc>, window_params = [{transform_indices = @transform_0, window_bounds = array<i64: 8, 256>}, {transform_indices = @transform_1, window_bounds = array<i64: 8, 256>}]} {
    %c0 = arith.constant 0 : index
    %c0_0 = arith.constant 0 : index
    %0 = vector.load %arg1[%c0, %c0_0] : memref<8x256xf32, #tpu.memory_space<vmem>>, vector<8x256xf32>
    %cst = arith.constant dense<0x7F800000> : vector<8xf32>
    %1 = vector.multi_reduction <minimumf>, %0, %cst [1] : vector<8x256xf32> to vector<8xf32>
    %2 = vector.shape_cast %1 : vector<8xf32> to vector<8x1xf32>
    %cst_1 = arith.constant dense<0xFF800000> : vector<8xf32>
    %3 = vector.multi_reduction <maximumf>, %0, %cst_1 [1] : vector<8x256xf32> to vector<8xf32>
    %4 = vector.shape_cast %3 : vector<8xf32> to vector<8x1xf32>
    %5 = arith.subf %4, %2 : vector<8x1xf32>
    %cst_2 = arith.constant 1.000000e+00 : f32
    %6 = vector.broadcast %cst_2 : f32 to vector<8x1xf32>
    %7 = arith.divf %6, %5 : vector<8x1xf32>
    %cst_3 = arith.constant 3.40282347E+38 : f32
    %8 = vector.broadcast %cst_3 : f32 to vector<8x1xf32>
    %9 = arith.cmpf ogt, %7, %8 : vector<8x1xf32>
    %cst_4 = arith.constant 1.000000e+00 : f32
    %10 = vector.broadcast %cst_4 : f32 to vector<8x1xf32>
    %11 = arith.select %9, %10, %7 : vector<8x1xi1>, vector<8x1xf32>
    %cst_5 = arith.constant 0.000000e+00 : f32
    %12 = vector.broadcast %cst_5 : f32 to vector<8x1xf32>
    %13 = arith.select %9, %12, %2 : vector<8x1xi1>, vector<8x1xf32>
    %14 = vector.broadcast %13 : vector<8x1xf32> to vector<8x256xf32>
    %15 = arith.subf %0, %14 : vector<8x256xf32>
    %16 = vector.broadcast %11 : vector<8x1xf32> to vector<8x256xf32>
    %17 = arith.mulf %15, %16 : vector<8x256xf32>
    %cst_6 = arith.constant 0.000000e+00 : f32
    %cst_7 = arith.constant 1.000000e+00 : f32
    %18 = vector.broadcast %cst_6 : f32 to vector<8x256xf32>
    %19 = arith.maximumf %18, %17 : vector<8x256xf32>
    %20 = vector.broadcast %cst_7 : f32 to vector<8x256xf32>
    %21 = arith.minimumf %20, %19 : vector<8x256xf32>
    %c0_8 = arith.constant 0 : index
    %c0_9 = arith.constant 0 : index
    %22 = vector.load %arg2[%c0_8, %c0_9] : memref<8x256xf32, #tpu.memory_space<vmem>>, vector<8x256xf32>
    tpu.vector_store %arg2[%c0_8, %c0_9], %21 {strides = array<i32>} : memref<8x256xf32, #tpu.memory_space<vmem>>, vector<8x256xf32>,
    return
  }
  func.func @transform_0(%arg0: i32) -> (i32, i32) {
    %c0_i32 = arith.constant 0 : i32
    %c0_i32_0 = arith.constant 0 : i32
    return %arg0, %c0_i32 : i32, i32
  }
  func.func @transform_1(%arg0: i32) -> (i32, i32) {
    %c0_i32 = arith.constant 0 : i32
    %c0_i32_0 = arith.constant 0 : i32
    return %arg0, %c0_i32 : i32, i32
  }
}

</mosaic_0001>

<llo_original>
// kernel: tpu_custom_call.1
$region0: #{tpu_custom_call.1}
  #allocation0 [shape = 'u32[]', space=smem, size = 0x4, offset = 0x4, fixed_abs, tag = 'smem constant byte address 0x4 - core index']
  #allocation1 [shape = 'u32[144,128]{1,0:T(1,128)}', space=vmem, size = 0x12000, scoped, tag = 'internal scratch']
  %s0 = inlined_call_operand.hbm [shape: f32[8,256], index: 0, kind: input, shape index: {}]
  %s1 = inlined_call_operand.hbm [shape: f32[8,256], index: 1, kind: output, shape index: {}]
  %s2 = sld [smem:[#allocation0]]
  $region18: #{tpu_custom_call.1} parent=0
    _
  %s4 = ssub.s32 1, %s2
  %s5 = scalar_select 0, %s4, %s2
  $region1: #{tpu_custom_call.1} parent=0
    #allocation2 [shape = 'u8[8192]{0}', space=vmem, size = 0x2000, scoped, tag = 'input window, operand 0, single buffered']
    #allocation3 [shape = 's32[1]{0}', space=sflag, size = 0x4, scoped, tag = 'scoped memory for tpu_custom_call.1']
    #allocation4 [shape = 's32[1]{0}', space=sflag, size = 0x4, scoped, tag = 'scoped memory for tpu_custom_call.1']
    #allocation5 [shape = 'u8[8192]{0}', space=vmem, size = 0x2000, scoped, tag = 'output window, operand 0, single buffered']
    %6 = vsyncpa [#allocation3], 0
    %7 = vsyncpa [#allocation4], 0
    // Predicated region
    $region2: #{tpu_custom_call.1} parent=1 // pred_check
      _
    $region3: #{tpu_custom_call.1} parent=1 // pred_check_branch
      %9 = sbr.rel (0) target = $region5
    $region4: #{tpu_custom_call.1} parent=1 // pred_region
      %s11 = ssub.s32 256, 256
      %12 = vsyncadd [#allocation3], %s11
      %s14 = sshll.u32 [#allocation2], 4
      %s15 = int_to_ptr.vmem [resolvable:$true] %s14
      %17 = dma.hbm_to_vmem [thread:$0]  %s0, 256, %s15, [#allocation3]
    $region5: #{tpu_custom_call.1} parent=1 // pred_fallthru
      _
    // Predicated region
    $region6: #{tpu_custom_call.1} parent=1 // pred_check
      _
    $region7: #{tpu_custom_call.1} parent=1 // pred_check_branch
      %19 = sbr.rel (0) target = $region9
    $region8: #{tpu_custom_call.1} parent=1 // pred_region
      %20 = dma.done [#allocation3], 256
    $region9: #{tpu_custom_call.1} parent=1 // pred_fallthru
      _
    %v21 = vld [vmem:[#allocation2] sm:$0xff]
    %v22 = vld [vmem:[#allocation2 + $0x8] sm:$0xff]
    %v23 = vmin.f32 %v21, %v22
    %24 = vmin.xlane.f32.xlu0 %v23
    %v25 = vpop.xlane.xlu0 %24
    %v26 = vmax.f32 %v21, %v22
    %27 = vmax.xlane.f32.xlu0 %v26
    %v28 = vpop.xlane.xlu0 %27
    %v29 = vsub.f32 %v28, %v25
    %v30 = vrcp.pop %v29
    %v31 = vmul.f32 1.0, %v30
    %vm32 = vcmp.gt.f32.partialorder %v31, 3.4028235e+38
    %v33 = vsel %vm32, 1.0, %v31
    %v34 = vsel %vm32, 0.0, %v25
    %v35 = vsub.f32 %v21, %v34
    %v36 = vsub.f32 %v22, %v34
    %v37 = vmul.f32 %v35, %v33
    %v38 = vmul.f32 %v36, %v33
    %v39 = vmax.f32 %v37, 0.0
    %v40 = vmax.f32 %v38, 0.0
    %v41 = vmin.f32 %v39, 1.0
    %v42 = vmin.f32 %v40, 1.0
    %43 = vst [vmem:[#allocation5] sm:$0xff] %v41
    %44 = vst [vmem:[#allocation5 + $0x8] sm:$0xff] %v42
    // Predicated region
    $region10: #{tpu_custom_call.1} parent=1 // pred_check
      _
    $region11: #{tpu_custom_call.1} parent=1 // pred_check_branch
      %46 = sbr.rel (0) target = $region13
    $region12: #{tpu_custom_call.1} parent=1 // pred_region
      %s48 = ssub.s32 256, 256
      %49 = vsyncadd [#allocation4], %s48
      %s51 = sshll.u32 [#allocation5], 4
      %s52 = int_to_ptr.vmem [resolvable:$true] %s51
      %54 = dma.vmem_to_hbm [thread:$0]  %s52, 256, %s1, [#allocation4]
    $region13: #{tpu_custom_call.1} parent=1 // pred_fallthru
      _
    // Predicated region
    $region14: #{tpu_custom_call.1} parent=1 // pred_check
      _
    $region15: #{tpu_custom_call.1} parent=1 // pred_check_branch
      %56 = sbr.rel (0) target = $region17
    $region16: #{tpu_custom_call.1} parent=1 // pred_region
      %57 = dma.done [#allocation4], 256
    $region17: #{tpu_custom_call.1} parent=1 // pred_fallthru
      _
    %58 = vsyncpa [#allocation3], 1
    %59 = vsyncpa [#allocation4], 1

</llo_original>
